<compile_context>
chip_gen: v6e
topology: v6e:2x2x1
jax: 0.10.0
libtpu: 0.0.40
codegen_flags: <defaults>
</compile_context>

<pallas_src>
import functools

import jax
import jax.numpy as jnp
from jax.experimental import pallas as pl
from jax.experimental.pallas import tpu as pltpu


def _block_kernel(x_ref, wdw_ref, ml_ref, mr_ref, s1_ref, b1_ref,
                  wpw_ref, s2_ref, b2_ref, o_ref, *, width, padl):
    """Per grid step: a batch tile in fused-lane layout.

    x_ref  : (BT, Cin, H*W)   input images, spatial dims fused on the lane axis
    wdw_ref: (Cin, 9)         depthwise 3x3 weights, tap index = kh*3 + kw
    ml/mr  : (1, H*W)         column-wrap masks for the -1 / +1 lane shifts
    s1/b1  : (Cin, 1)         folded BN1 scale / bias
    wpw_ref: (Cout, Cin)      pointwise 1x1 weights
    s2/b2  : (Cout, 1)        folded BN2 scale / bias
    o_ref  : (BT, Cout, H*W)  stride-1 output (lane-dense, unmasked stores)
    """
    bt, cin, hw = x_ref.shape
    cout = o_ref.shape[1]

    wdw = wdw_ref[...].astype(jnp.float32)        # (Cin, 9)
    wpw = wpw_ref[...].astype(jnp.float32)        # (Cout, Cin)
    s1, b1 = s1_ref[...], b1_ref[...]             # (Cin, 1)
    s2, b2 = s2_ref[...], b2_ref[...]             # (Cout, 1)
    mask_l, mask_r = ml_ref[...], mr_ref[...]     # (1, H*W)
    zpad = jnp.zeros((cin, padl), jnp.float32)    # lane-aligned zero extension

    for b in range(bt):
        x = x_ref[b].astype(jnp.float32)          # (Cin, H*W)
        # Zero-extend along the fused lane axis; row over/underflow of any tap
        # lands in these zeros (== the conv's zero padding in H).
        xz = jnp.concatenate([zpad, x, zpad], axis=-1)

        # ---- depthwise 3x3: 9 lane-shifted reads + VPU MAC ----
        acc = jnp.zeros((cin, hw), jnp.float32)
        for kh in range(3):
            for kw in range(3):
                delta = (kh - 1) * width + (kw - 1)
                start = padl + delta              # static python int
                tap = xz[:, start:start + hw]     # (Cin, H*W)
                k = kh * 3 + kw
                contrib = tap * wdw[:, k:k + 1]
                if kw == 0:                       # reading column j-1: invalid at j==0
                    contrib = contrib * mask_l
                elif kw == 2:                     # reading column j+1: invalid at j==W-1
                    contrib = contrib * mask_r
                acc = acc + contrib

        # ---- BN1 + ReLU ----
        h1 = jnp.maximum(acc * s1 + b1, 0.0)      # (Cin, H*W)

        # ---- pointwise 1x1 conv: contract the channel (sublane) axis ----
        if cin <= 16:
            # Tiny K/N: the MXU would be ~99% idle; do it on the VPU.
            y = jnp.zeros((cout, hw), jnp.float32)
            for ci in range(cin):
                y = y + wpw[:, ci:ci + 1] * h1[ci:ci + 1, :]
        else:
            # Realistic widths: MXU matmul (bf16 operands would be faster on
            # v6e/v7x but would loosen the test tolerance -- kept f32 here).
            y = jnp.dot(wpw, h1, preferred_element_type=jnp.float32)

        # ---- BN2 + ReLU ----
        y = jnp.maximum(y * s2 + b2, 0.0)
        o_ref[b] = y.astype(o_ref.dtype)


def mobilenet_block(x_nchw, w_dw, gamma1, beta1, mean1, var1,
                    w_pw, gamma2, beta2, mean2, var2,
                    *, stride=1, eps=1e-5, batch_tile=1):
    """Forward pass equivalent to Block.forward (PyTorch NCHW in / NCHW out)."""
    n, cin, h, w = x_nchw.shape
    cout = w_pw.shape[0]
    hw = h * w
    assert n % batch_tile == 0, "batch_tile must divide the batch size"

    # Free minor-dim collapse (no transpose, no pad copy in HBM).
    x3 = x_nchw.reshape(n, cin, hw)

    # PyTorch depthwise weight (Cin, 1, 3, 3) -> (Cin, 9); pointwise (Cout,Cin,1,1) -> (Cout,Cin)
    wdw = w_dw[:, 0].reshape(cin, 9)
    wpw = w_pw[:, :, 0, 0]

    # Fold eval-mode BatchNorm into per-channel scale / bias.
    inv1 = gamma1 / jnp.sqrt(var1 + eps)
    s1 = inv1.reshape(cin, 1).astype(jnp.float32)
    b1 = (beta1 - mean1 * inv1).reshape(cin, 1).astype(jnp.float32)
    inv2 = gamma2 / jnp.sqrt(var2 + eps)
    s2 = inv2.reshape(cout, 1).astype(jnp.float32)
    b2 = (beta2 - mean2 * inv2).reshape(cout, 1).astype(jnp.float32)

    # Column-wrap masks over the fused lane index p = i*W + j.
    col = jnp.arange(hw, dtype=jnp.int32) % w
    mask_l = (col > 0).astype(jnp.float32).reshape(1, hw)
    mask_r = (col < w - 1).astype(jnp.float32).reshape(1, hw)

    padl = pl.cdiv(w + 1, 128) * 128              # lane-aligned zero extension width

    kernel = functools.partial(_block_kernel, width=w, padl=padl)

    flops = n * hw * (2 * 9 * cin + 2 * cin + 2 * cin * cout + 2 * cout)
    bytes_accessed = 4 * (n * cin * hw + cin * 9 + cout * cin
                          + 2 * (cin + cout) + 2 * hw + n * cout * hw)

    out3 = pl.pallas_call(
        kernel,
        out_shape=jax.ShapeDtypeStruct((n, cout, hw), x_nchw.dtype),
        grid_spec=pltpu.PrefetchScalarGridSpec(
            num_scalar_prefetch=0,
            grid=(n // batch_tile,),
            in_specs=[
                pl.BlockSpec((batch_tile, cin, hw), lambda i: (i, 0, 0)),
                pl.BlockSpec((cin, 9), lambda i: (0, 0)),
                pl.BlockSpec((1, hw), lambda i: (0, 0)),
                pl.BlockSpec((1, hw), lambda i: (0, 0)),
                pl.BlockSpec((cin, 1), lambda i: (0, 0)),
                pl.BlockSpec((cin, 1), lambda i: (0, 0)),
                pl.BlockSpec((cout, cin), lambda i: (0, 0)),
                pl.BlockSpec((cout, 1), lambda i: (0, 0)),
                pl.BlockSpec((cout, 1), lambda i: (0, 0)),
            ],
            out_specs=pl.BlockSpec((batch_tile, cout, hw),
                                   lambda i: (i, 0, 0)),
        ),
        compiler_params=pltpu.CompilerParams(
            dimension_semantics=("parallel",)),      # batch steps are independent
        cost_estimate=pl.CostEstimate(flops=flops, transcendentals=0,
                                      bytes_accessed=bytes_accessed),
    )(x3, wdw, mask_l, mask_r, s1, b1, wpw, s2, b2)

    out = out3.reshape(n, cout, h, w)
    if stride > 1:
        # conv(stride=s) == subsample(conv(stride=1)); BN/ReLU/1x1 are pointwise.
        out = out[:, :, ::stride, ::stride]
    return out


def _reference(x_nchw, w_dw, gamma1, beta1, mean1, var1,
               w_pw, gamma2, beta2, mean2, var2, *, stride=1, eps=1e-5):
    """Plain-JAX reference matching the PyTorch forward (eval-mode BN)."""
    cin = x_nchw.shape[1]
    out = jax.lax.conv_general_dilated(
        x_nchw, w_dw, (stride, stride), ((1, 1), (1, 1)),
        feature_group_count=cin,
        dimension_numbers=("NCHW", "OIHW", "NCHW"))
    out = (out - mean1[None, :, None, None]) / jnp.sqrt(var1 + eps)[None, :, None, None]
    out = out * gamma1[None, :, None, None] + beta1[None, :, None, None]
    out = jnp.maximum(out, 0.0)
    out = jax.lax.conv_general_dilated(
        out, w_pw, (1, 1), ((0, 0), (0, 0)),
        dimension_numbers=("NCHW", "OIHW", "NCHW"))
    out = (out - mean2[None, :, None, None]) / jnp.sqrt(var2 + eps)[None, :, None, None]
    out = out * gamma2[None, :, None, None] + beta2[None, :, None, None]
    return jnp.maximum(out, 0.0)


if __name__ == "__main__":
    in_planes, out_planes = 8, 16
    n, h, w = 2, 16, 16

    key = jax.random.PRNGKey(0)
    k_x, k_dw, k_pw, k_g1, k_b1, k_g2, k_b2 = jax.random.split(key, 7)

    x = jax.random.normal(k_x, (n, in_planes, h, w), jnp.float32)

    # Conv weights (same shapes as nn.Conv2d in the module, bias=False).
    w_dw = jax.random.normal(k_dw, (in_planes, 1, 3, 3), jnp.float32) * 0.2
    w_pw = jax.random.normal(k_pw, (out_planes, in_planes, 1, 1), jnp.float32) * 0.2

    # BatchNorm params (affine learnable; running stats at PyTorch defaults).
    gamma1 = 1.0 + 0.1 * jax.random.normal(k_g1, (in_planes,), jnp.float32)
    beta1 = 0.1 * jax.random.normal(k_b1, (in_planes,), jnp.float32)
    mean1 = jnp.zeros((in_planes,), jnp.float32)
    var1 = jnp.ones((in_planes,), jnp.float32)
    gamma2 = 1.0 + 0.1 * jax.random.normal(k_g2, (out_planes,), jnp.float32)
    beta2 = 0.1 * jax.random.normal(k_b2, (out_planes,), jnp.float32)
    mean2 = jnp.zeros((out_planes,), jnp.float32)
    var2 = jnp.ones((out_planes,), jnp.float32)

    for stride in (1, 2):
        out = mobilenet_block(x, w_dw, gamma1, beta1, mean1, var1,
                              w_pw, gamma2, beta2, mean2, var2, stride=stride)
        out = jax.block_until_ready(out)
        ref = _reference(x, w_dw, gamma1, beta1, mean1, var1,
                         w_pw, gamma2, beta2, mean2, var2, stride=stride)
        assert out.shape == ref.shape, (out.shape, ref.shape)
        assert jnp.allclose(out, ref, rtol=1e-4, atol=1e-4), \
            float(jnp.max(jnp.abs(out - ref)))

    print("KERNEL_OK")
</pallas_src>

<mosaic_0001>
module attributes {stable_mosaic.version = 11 : i64} {
  func.func @_block_kernel(%arg0: i32, %arg1: memref<1x8x256xf32, #tpu.memory_space<vmem>>, %arg2: memref<8x9xf32, #tpu.memory_space<vmem>>, %arg3: memref<1x256xf32, #tpu.memory_space<vmem>>, %arg4: memref<1x256xf32, #tpu.memory_space<vmem>>, %arg5: memref<8x1xf32, #tpu.memory_space<vmem>>, %arg6: memref<8x1xf32, #tpu.memory_space<vmem>>, %arg7: memref<16x8xf32, #tpu.memory_space<vmem>>, %arg8: memref<16x1xf32, #tpu.memory_space<vmem>>, %arg9: memref<16x1xf32, #tpu.memory_space<vmem>>, %arg10: memref<1x16x256xf32, #tpu.memory_space<vmem>>) attributes {dimension_semantics = [#tpu.dimension_semantics<parallel>], iteration_bounds = array<i64: 2>, scalar_prefetch = 0 : i64, scratch_operands = 0 : i64, tpu.core_type = #tpu.core_type<tc>, window_params = [{transform_indices = @transform_0, window_bounds = array<i64: 1, 8, 256>}, {pipeline_mode = #tpu.pipeline_mode<synchronous>, transform_indices = @transform_1, window_bounds = array<i64: 8, 9>}, {pipeline_mode = #tpu.pipeline_mode<synchronous>, transform_indices = @transform_2, window_bounds = array<i64: 1, 256>}, {pipeline_mode = #tpu.pipeline_mode<synchronous>, transform_indices = @transform_3, window_bounds = array<i64: 1, 256>}, {pipeline_mode = #tpu.pipeline_mode<synchronous>, transform_indices = @transform_4, window_bounds = array<i64: 8, 1>}, {pipeline_mode = #tpu.pipeline_mode<synchronous>, transform_indices = @transform_5, window_bounds = array<i64: 8, 1>}, {pipeline_mode = #tpu.pipeline_mode<synchronous>, transform_indices = @transform_6, window_bounds = array<i64: 16, 8>}, {pipeline_mode = #tpu.pipeline_mode<synchronous>, transform_indices = @transform_7, window_bounds = array<i64: 16, 1>}, {pipeline_mode = #tpu.pipeline_mode<synchronous>, transform_indices = @transform_8, window_bounds = array<i64: 16, 1>}, {transform_indices = @transform_9, window_bounds = array<i64: 1, 16, 256>}]} {
    %c0 = arith.constant 0 : index
    %c0_0 = arith.constant 0 : index
    %0 = vector.load %arg2[%c0, %c0_0] : memref<8x9xf32, #tpu.memory_space<vmem>>, vector<8x9xf32>
    %c0_1 = arith.constant 0 : index
    %c0_2 = arith.constant 0 : index
    %1 = vector.load %arg7[%c0_1, %c0_2] : memref<16x8xf32, #tpu.memory_space<vmem>>, vector<16x8xf32>
    %c0_3 = arith.constant 0 : index
    %c0_4 = arith.constant 0 : index
    %2 = vector.load %arg5[%c0_3, %c0_4] : memref<8x1xf32, #tpu.memory_space<vmem>>, vector<8x1xf32>
    %c0_5 = arith.constant 0 : index
    %c0_6 = arith.constant 0 : index
    %3 = vector.load %arg6[%c0_5, %c0_6] : memref<8x1xf32, #tpu.memory_space<vmem>>, vector<8x1xf32>
    %c0_7 = arith.constant 0 : index
    %c0_8 = arith.constant 0 : index
    %4 = vector.load %arg8[%c0_7, %c0_8] : memref<16x1xf32, #tpu.memory_space<vmem>>, vector<16x1xf32>
    %c0_9 = arith.constant 0 : index
    %c0_10 = arith.constant 0 : index
    %5 = vector.load %arg9[%c0_9, %c0_10] : memref<16x1xf32, #tpu.memory_space<vmem>>, vector<16x1xf32>
    %c0_11 = arith.constant 0 : index
    %c0_12 = arith.constant 0 : index
    %6 = vector.load %arg3[%c0_11, %c0_12] : memref<1x256xf32, #tpu.memory_space<vmem>>, vector<1x256xf32>
    %c0_13 = arith.constant 0 : index
    %c0_14 = arith.constant 0 : index
    %7 = vector.load %arg4[%c0_13, %c0_14] : memref<1x256xf32, #tpu.memory_space<vmem>>, vector<1x256xf32>
    %cst = arith.constant 0.000000e+00 : f32
    %8 = vector.broadcast %cst : f32 to vector<8x128xf32>
    %c0_15 = arith.constant 0 : index
    %c0_16 = arith.constant 0 : index
    %c0_17 = arith.constant 0 : index
    %9 = vector.load %arg1[%c0_15, %c0_16, %c0_17] : memref<1x8x256xf32, #tpu.memory_space<vmem>>, vector<1x8x256xf32>
    %10 = vector.shape_cast %9 : vector<1x8x256xf32> to vector<8x256xf32>
    %11 = tpu.concatenate %8, %10, %8 in 1 : vector<8x128xf32>, vector<8x256xf32>, vector<8x128xf32> -> vector<8x512xf32>
    %cst_18 = arith.constant 0.000000e+00 : f32
    %12 = vector.broadcast %cst_18 : f32 to vector<8x256xf32>
    %13 = vector.extract_strided_slice %11 {offsets = [0, 111], sizes = [8, 256], strides = [1, 1]} : vector<8x512xf32> to vector<8x256xf32>
    %14 = vector.extract_strided_slice %0 {offsets = [0, 0], sizes = [8, 1], strides = [1, 1]} : vector<8x9xf32> to vector<8x1xf32>
    %15 = vector.broadcast %14 : vector<8x1xf32> to vector<8x256xf32>
    %16 = arith.mulf %13, %15 : vector<8x256xf32>
    %17 = vector.broadcast %6 : vector<1x256xf32> to vector<8x256xf32>
    %18 = arith.mulf %16, %17 : vector<8x256xf32>
    %19 = arith.addf %12, %18 : vector<8x256xf32>
    %20 = vector.extract_strided_slice %11 {offsets = [0, 112], sizes = [8, 256], strides = [1, 1]} : vector<8x512xf32> to vector<8x256xf32>
    %21 = vector.extract_strided_slice %0 {offsets = [0, 1], sizes = [8, 1], strides = [1, 1]} : vector<8x9xf32> to vector<8x1xf32>
    %22 = vector.broadcast %21 : vector<8x1xf32> to vector<8x256xf32>
    %23 = arith.mulf %20, %22 : vector<8x256xf32>
    %24 = arith.addf %19, %23 : vector<8x256xf32>
    %25 = vector.extract_strided_slice %11 {offsets = [0, 113], sizes = [8, 256], strides = [1, 1]} : vector<8x512xf32> to vector<8x256xf32>
    %26 = vector.extract_strided_slice %0 {offsets = [0, 2], sizes = [8, 1], strides = [1, 1]} : vector<8x9xf32> to vector<8x1xf32>
    %27 = vector.broadcast %26 : vector<8x1xf32> to vector<8x256xf32>
    %28 = arith.mulf %25, %27 : vector<8x256xf32>
    %29 = vector.broadcast %7 : vector<1x256xf32> to vector<8x256xf32>
    %30 = arith.mulf %28, %29 : vector<8x256xf32>
    %31 = arith.addf %24, %30 : vector<8x256xf32>
    %32 = vector.extract_strided_slice %11 {offsets = [0, 127], sizes = [8, 256], strides = [1, 1]} : vector<8x512xf32> to vector<8x256xf32>
    %33 = vector.extract_strided_slice %0 {offsets = [0, 3], sizes = [8, 1], strides = [1, 1]} : vector<8x9xf32> to vector<8x1xf32>
    %34 = vector.broadcast %33 : vector<8x1xf32> to vector<8x256xf32>
    %35 = arith.mulf %32, %34 : vector<8x256xf32>
    %36 = vector.broadcast %6 : vector<1x256xf32> to vector<8x256xf32>
    %37 = arith.mulf %35, %36 : vector<8x256xf32>
    %38 = arith.addf %31, %37 : vector<8x256xf32>
    %39 = vector.extract_strided_slice %11 {offsets = [0, 128], sizes = [8, 256], strides = [1, 1]} : vector<8x512xf32> to vector<8x256xf32>
    %40 = vector.extract_strided_slice %0 {offsets = [0, 4], sizes = [8, 1], strides = [1, 1]} : vector<8x9xf32> to vector<8x1xf32>
    %41 = vector.broadcast %40 : vector<8x1xf32> to vector<8x256xf32>
    %42 = arith.mulf %39, %41 : vector<8x256xf32>
    %43 = arith.addf %38, %42 : vector<8x256xf32>
    %44 = vector.extract_strided_slice %11 {offsets = [0, 129], sizes = [8, 256], strides = [1, 1]} : vector<8x512xf32> to vector<8x256xf32>
    %45 = vector.extract_strided_slice %0 {offsets = [0, 5], sizes = [8, 1], strides = [1, 1]} : vector<8x9xf32> to vector<8x1xf32>
    %46 = vector.broadcast %45 : vector<8x1xf32> to vector<8x256xf32>
    %47 = arith.mulf %44, %46 : vector<8x256xf32>
    %48 = vector.broadcast %7 : vector<1x256xf32> to vector<8x256xf32>
    %49 = arith.mulf %47, %48 : vector<8x256xf32>
    %50 = arith.addf %43, %49 : vector<8x256xf32>
    %51 = vector.extract_strided_slice %11 {offsets = [0, 143], sizes = [8, 256], strides = [1, 1]} : vector<8x512xf32> to vector<8x256xf32>
    %52 = vector.extract_strided_slice %0 {offsets = [0, 6], sizes = [8, 1], strides = [1, 1]} : vector<8x9xf32> to vector<8x1xf32>
    %53 = vector.broadcast %52 : vector<8x1xf32> to vector<8x256xf32>
    %54 = arith.mulf %51, %53 : vector<8x256xf32>
    %55 = vector.broadcast %6 : vector<1x256xf32> to vector<8x256xf32>
    %56 = arith.mulf %54, %55 : vector<8x256xf32>
    %57 = arith.addf %50, %56 : vector<8x256xf32>
    %58 = vector.extract_strided_slice %11 {offsets = [0, 144], sizes = [8, 256], strides = [1, 1]} : vector<8x512xf32> to vector<8x256xf32>
    %59 = vector.extract_strided_slice %0 {offsets = [0, 7], sizes = [8, 1], strides = [1, 1]} : vector<8x9xf32> to vector<8x1xf32>
    %60 = vector.broadcast %59 : vector<8x1xf32> to vector<8x256xf32>
    %61 = arith.mulf %58, %60 : vector<8x256xf32>
    %62 = arith.addf %57, %61 : vector<8x256xf32>
    %63 = vector.extract_strided_slice %11 {offsets = [0, 145], sizes = [8, 256], strides = [1, 1]} : vector<8x512xf32> to vector<8x256xf32>
    %64 = vector.extract_strided_slice %0 {offsets = [0, 8], sizes = [8, 1], strides = [1, 1]} : vector<8x9xf32> to vector<8x1xf32>
    %65 = vector.broadcast %64 : vector<8x1xf32> to vector<8x256xf32>
    %66 = arith.mulf %63, %65 : vector<8x256xf32>
    %67 = vector.broadcast %7 : vector<1x256xf32> to vector<8x256xf32>
    %68 = arith.mulf %66, %67 : vector<8x256xf32>
    %69 = arith.addf %62, %68 : vector<8x256xf32>
    %70 = vector.broadcast %2 : vector<8x1xf32> to vector<8x256xf32>
    %71 = arith.mulf %69, %70 : vector<8x256xf32>
    %72 = vector.broadcast %3 : vector<8x1xf32> to vector<8x256xf32>
    %73 = arith.addf %71, %72 : vector<8x256xf32>
    %cst_19 = arith.constant 0.000000e+00 : f32
    %74 = vector.broadcast %cst_19 : f32 to vector<8x256xf32>
    %75 = arith.maximumf %73, %74 : vector<8x256xf32>
    %cst_20 = arith.constant 0.000000e+00 : f32
    %76 = vector.broadcast %cst_20 : f32 to vector<16x256xf32>
    %77 = vector.extract_strided_slice %1 {offsets = [0, 0], sizes = [16, 1], strides = [1, 1]} : vector<16x8xf32> to vector<16x1xf32>
    %78 = vector.extract_strided_slice %75 {offsets = [0, 0], sizes = [1, 256], strides = [1, 1]} : vector<8x256xf32> to vector<1x256xf32>
    %79 = vector.broadcast %77 : vector<16x1xf32> to vector<16x256xf32>
    %80 = vector.broadcast %78 : vector<1x256xf32> to vector<16x256xf32>
    %81 = arith.mulf %79, %80 : vector<16x256xf32>
    %82 = arith.addf %76, %81 : vector<16x256xf32>
    %83 = vector.extract_strided_slice %1 {offsets = [0, 1], sizes = [16, 1], strides = [1, 1]} : vector<16x8xf32> to vector<16x1xf32>
    %84 = vector.extract_strided_slice %75 {offsets = [1, 0], sizes = [1, 256], strides = [1, 1]} : vector<8x256xf32> to vector<1x256xf32>
    %85 = vector.broadcast %83 : vector<16x1xf32> to vector<16x256xf32>
    %86 = vector.broadcast %84 : vector<1x256xf32> to vector<16x256xf32>
    %87 = arith.mulf %85, %86 : vector<16x256xf32>
    %88 = arith.addf %82, %87 : vector<16x256xf32>
    %89 = vector.extract_strided_slice %1 {offsets = [0, 2], sizes = [16, 1], strides = [1, 1]} : vector<16x8xf32> to vector<16x1xf32>
    %90 = vector.extract_strided_slice %75 {offsets = [2, 0], sizes = [1, 256], strides = [1, 1]} : vector<8x256xf32> to vector<1x256xf32>
    %91 = vector.broadcast %89 : vector<16x1xf32> to vector<16x256xf32>
    %92 = vector.broadcast %90 : vector<1x256xf32> to vector<16x256xf32>
    %93 = arith.mulf %91, %92 : vector<16x256xf32>
    %94 = arith.addf %88, %93 : vector<16x256xf32>
    %95 = vector.extract_strided_slice %1 {offsets = [0, 3], sizes = [16, 1], strides = [1, 1]} : vector<16x8xf32> to vector<16x1xf32>
    %96 = vector.extract_strided_slice %75 {offsets = [3, 0], sizes = [1, 256], strides = [1, 1]} : vector<8x256xf32> to vector<1x256xf32>
    %97 = vector.broadcast %95 : vector<16x1xf32> to vector<16x256xf32>
    %98 = vector.broadcast %96 : vector<1x256xf32> to vector<16x256xf32>
    %99 = arith.mulf %97, %98 : vector<16x256xf32>
    %100 = arith.addf %94, %99 : vector<16x256xf32>
    %101 = vector.extract_strided_slice %1 {offsets = [0, 4], sizes = [16, 1], strides = [1, 1]} : vector<16x8xf32> to vector<16x1xf32>
    %102 = vector.extract_strided_slice %75 {offsets = [4, 0], sizes = [1, 256], strides = [1, 1]} : vector<8x256xf32> to vector<1x256xf32>
    %103 = vector.broadcast %101 : vector<16x1xf32> to vector<16x256xf32>
    %104 = vector.broadcast %102 : vector<1x256xf32> to vector<16x256xf32>
    %105 = arith.mulf %103, %104 : vector<16x256xf32>
    %106 = arith.addf %100, %105 : vector<16x256xf32>
    %107 = vector.extract_strided_slice %1 {offsets = [0, 5], sizes = [16, 1], strides = [1, 1]} : vector<16x8xf32> to vector<16x1xf32>
    %108 = vector.extract_strided_slice %75 {offsets = [5, 0], sizes = [1, 256], strides = [1, 1]} : vector<8x256xf32> to vector<1x256xf32>
    %109 = vector.broadcast %107 : vector<16x1xf32> to vector<16x256xf32>
    %110 = vector.broadcast %108 : vector<1x256xf32> to vector<16x256xf32>
    %111 = arith.mulf %109, %110 : vector<16x256xf32>
    %112 = arith.addf %106, %111 : vector<16x256xf32>
    %113 = vector.extract_strided_slice %1 {offsets = [0, 6], sizes = [16, 1], strides = [1, 1]} : vector<16x8xf32> to vector<16x1xf32>
    %114 = vector.extract_strided_slice %75 {offsets = [6, 0], sizes = [1, 256], strides = [1, 1]} : vector<8x256xf32> to vector<1x256xf32>
    %115 = vector.broadcast %113 : vector<16x1xf32> to vector<16x256xf32>
    %116 = vector.broadcast %114 : vector<1x256xf32> to vector<16x256xf32>
    %117 = arith.mulf %115, %116 : vector<16x256xf32>
    %118 = arith.addf %112, %117 : vector<16x256xf32>
    %119 = vector.extract_strided_slice %1 {offsets = [0, 7], sizes = [16, 1], strides = [1, 1]} : vector<16x8xf32> to vector<16x1xf32>
    %120 = vector.extract_strided_slice %75 {offsets = [7, 0], sizes = [1, 256], strides = [1, 1]} : vector<8x256xf32> to vector<1x256xf32>
    %121 = vector.broadcast %119 : vector<16x1xf32> to vector<16x256xf32>
    %122 = vector.broadcast %120 : vector<1x256xf32> to vector<16x256xf32>
    %123 = arith.mulf %121, %122 : vector<16x256xf32>
    %124 = arith.addf %118, %123 : vector<16x256xf32>
    %125 = vector.broadcast %4 : vector<16x1xf32> to vector<16x256xf32>
    %126 = arith.mulf %124, %125 : vector<16x256xf32>
    %127 = vector.broadcast %5 : vector<16x1xf32> to vector<16x256xf32>
    %128 = arith.addf %126, %127 : vector<16x256xf32>
    %cst_21 = arith.constant 0.000000e+00 : f32
    %129 = vector.broadcast %cst_21 : f32 to vector<16x256xf32>
    %130 = arith.maximumf %128, %129 : vector<16x256xf32>
    %c0_22 = arith.constant 0 : index
    %c0_23 = arith.constant 0 : index
    %c0_24 = arith.constant 0 : index
    %131 = vector.load %arg10[%c0_22, %c0_23, %c0_24] : memref<1x16x256xf32, #tpu.memory_space<vmem>>, vector<1x16x256xf32>
    %132 = vector.shape_cast %131 : vector<1x16x256xf32> to vector<16x256xf32>
    %133 = vector.shape_cast %130 : vector<16x256xf32> to vector<1x16x256xf32>
    tpu.vector_store %arg10[%c0_22, %c0_23, %c0_24], %133 {strides = array<i32>} : memref<1x16x256xf32, #tpu.memory_space<vmem>>, vector<1x16x256xf32>,
    return
  }
  func.func @transform_0(%arg0: i32) -> (i32, i32, i32) {
    %c0_i32 = arith.constant 0 : i32
    %c0_i32_0 = arith.constant 0 : i32
    %c0_i32_1 = arith.constant 0 : i32
    return %arg0, %c0_i32, %c0_i32_0 : i32, i32, i32
  }
  func.func @transform_1(%arg0: i32) -> (i32, i32) {
    %c0_i32 = arith.constant 0 : i32
    %c0_i32_0 = arith.constant 0 : i32
    %c0_i32_1 = arith.constant 0 : i32
    return %c0_i32, %c0_i32_0 : i32, i32
  }
  func.func @transform_2(%arg0: i32) -> (i32, i32) {
    %c0_i32 = arith.constant 0 : i32
    %c0_i32_0 = arith.constant 0 : i32
    %c0_i32_1 = arith.constant 0 : i32
    return %c0_i32, %c0_i32_0 : i32, i32
  }
  func.func @transform_3(%arg0: i32) -> (i32, i32) {
    %c0_i32 = arith.constant 0 : i32
    %c0_i32_0 = arith.constant 0 : i32
    %c0_i32_1 = arith.constant 0 : i32
    return %c0_i32, %c0_i32_0 : i32, i32
  }
  func.func @transform_4(%arg0: i32) -> (i32, i32) {
    %c0_i32 = arith.constant 0 : i32
    %c0_i32_0 = arith.constant 0 : i32
    %c0_i32_1 = arith.constant 0 : i32
    return %c0_i32, %c0_i32_0 : i32, i32
  }
  func.func @transform_5(%arg0: i32) -> (i32, i32) {
    %c0_i32 = arith.constant 0 : i32
    %c0_i32_0 = arith.constant 0 : i32
    %c0_i32_1 = arith.constant 0 : i32
    return %c0_i32, %c0_i32_0 : i32, i32
  }
  func.func @transform_6(%arg0: i32) -> (i32, i32) {
    %c0_i32 = arith.constant 0 : i32
    %c0_i32_0 = arith.constant 0 : i32
    %c0_i32_1 = arith.constant 0 : i32
    return %c0_i32, %c0_i32_0 : i32, i32
  }
  func.func @transform_7(%arg0: i32) -> (i32, i32) {
    %c0_i32 = arith.constant 0 : i32
    %c0_i32_0 = arith.constant 0 : i32
    %c0_i32_1 = arith.constant 0 : i32
    return %c0_i32, %c0_i32_0 : i32, i32
  }
  func.func @transform_8(%arg0: i32) -> (i32, i32) {
    %c0_i32 = arith.constant 0 : i32
    %c0_i32_0 = arith.constant 0 : i32
    %c0_i32_1 = arith.constant 0 : i32
    return %c0_i32, %c0_i32_0 : i32, i32
  }
  func.func @transform_9(%arg0: i32) -> (i32, i32, i32) {
    %c0_i32 = arith.constant 0 : i32
    %c0_i32_0 = arith.constant 0 : i32
    %c0_i32_1 = arith.constant 0 : i32
    return %arg0, %c0_i32, %c0_i32_0 : i32, i32, i32
  }
}

</mosaic_0001>

<llo_original>
// kernel: tpu_custom_call.1
$region0: #{tpu_custom_call.1}
  #allocation0 [shape = 'u32[]', space=smem, size = 0x4, offset = 0x4, fixed_abs, tag = 'smem constant byte address 0x4 - core index']
  #allocation1 [shape = 'u32[144,128]{1,0:T(1,128)}', space=vmem, size = 0x12000, scoped, tag = 'internal scratch']
  %s0 = inlined_call_operand.vmem [shape: f32[2,8,256], index: 0, kind: input, shape index: {}]
  %s1 = inlined_call_operand.vmem [shape: f32[8,9], index: 1, kind: input, shape index: {}]
  %s2 = inlined_call_operand.vmem [shape: f32[1,256], index: 2, kind: input, shape index: {}]
  %s3 = inlined_call_operand.vmem [shape: f32[1,256], index: 3, kind: input, shape index: {}]
  %s4 = inlined_call_operand.vmem [shape: f32[8,1], index: 4, kind: input, shape index: {}]
  %s5 = inlined_call_operand.vmem [shape: f32[8,1], index: 5, kind: input, shape index: {}]
  %s6 = inlined_call_operand.vmem [shape: f32[16,8], index: 6, kind: input, shape index: {}]
  %s7 = inlined_call_operand.vmem [shape: f32[16,1], index: 7, kind: input, shape index: {}]
  %s8 = inlined_call_operand.vmem [shape: f32[16,1], index: 8, kind: input, shape index: {}]
  %s9 = inlined_call_operand.hbm [shape: f32[2,16,256], index: 9, kind: output, shape index: {}]
  %s10 = sld [smem:[#allocation0]]
  $region69: #{tpu_custom_call.1} parent=0
    _
  %s12 = ssub.s32 1, %s10
  %s13 = scalar_select 0, %s12, %s10
  $region1: #{tpu_custom_call.1} parent=0
    #allocation2 [shape = 'u8[32768]{0}', space=vmem, size = 0x8000, scoped, tag = 'output window, operand 0']
    #allocation3 [shape = 's32[2]{0}', space=sflag, size = 0x8, scoped, tag = 'scoped memory for tpu_custom_call.1']
    %14 = vsyncpa [#allocation3], 0
    %s15 = scalar_lea.sflag [#allocation3], 1
    %16 = vsyncpa %s15, 0
    loop: start=0, step=1, limit=4
    $region2: #{tpu_custom_call.1} parent=1 // loop_pre_header
      _
    $region3: #{tpu_custom_call.1} parent=1 // loop_header
      %s18 = sphi 0, %s22
      %p19 = scmp.ge.s32.totalorder %s18, 4
      %s28 = sphi 0, %s30
      %s31 = sphi 0, %s28
      %s32 = sphi 0, %s31
      %s48 = sphi 0, %s32
      %s52 = sphi 0, %s52
      %s54 = sphi 0, %s52
      %s55 = sphi 0, %s54
      %s69 = sphi 0, %s55
      %s73 = sphi 0, %s73
      %s75 = sphi 0, %s73
      %s76 = sphi 0, %s75
      %s90 = sphi 0, %s76
      %s94 = sphi 0, %s94
      %s96 = sphi 0, %s94
      %s97 = sphi 0, %s96
      %s111 = sphi 0, %s97
      %s115 = sphi 0, %s115
      %s117 = sphi 0, %s115
      %s118 = sphi 0, %s117
      %s132 = sphi 0, %s118
      %s136 = sphi 0, %s136
      %s138 = sphi 0, %s136
      %s139 = sphi 0, %s138
      %s153 = sphi 0, %s139
      %s157 = sphi 0, %s157
      %s159 = sphi 0, %s157
      %s160 = sphi 0, %s159
      %s174 = sphi 0, %s160
      %s178 = sphi 0, %s178
      %s180 = sphi 0, %s178
      %s181 = sphi 0, %s180
      %s195 = sphi 0, %s181
      %s199 = sphi 0, %s199
      %s201 = sphi 0, %s199
      %s202 = sphi 0, %s201
      %s216 = sphi 0, %s202
      %s222 = sphi 0, %s224
      %s225 = sphi 0, %s222
      %s226 = sphi 0, %s225
      %s242 = sphi 0, %s226
    $region4: #{tpu_custom_call.1} parent=1 // loop_header_branch
      %21 = sbr.rel (%p19) target = $region8
    $region5: #{tpu_custom_call.1} parent=1 // loop_body
      %s23 = ssub.s32 %s18, 1
      %s24 = ssub.s32 %s18, 2
      %s25 = sadd.s32 %s18, 1
      %s26 = ssub.s32 %s18, %s25
      %p27 = scmp.eq.s32.totalorder %s26, 0
      %s29 = sadd.s32 %s28, 1
      %s30 = scalar_select %p27, %s28, %s29
      %p33 = pneg %p27
      %p34 = scmp.eq.s32.totalorder %s18, 1
      %p35 = por %p33, %p34
      %p36 = scmp.ne.s32.totalorder %s28, %s31
      %p37 = scmp.eq.s32.totalorder %s18, 0
      %p38 = por %p36, %p37
      %p39 = scmp.ne.s32.totalorder %s28, %s31
      %p40 = scmp.eq.s32.totalorder %s23, 1
      %p41 = por %p39, %p40
      %p42 = scmp.ne.s32.totalorder %s31, %s32
      %p43 = scmp.eq.s32.totalorder %s23, 0
      %p44 = por %p42, %p43
      %p45 = scmp.ne.s32.totalorder %s31, %s32
      %p46 = scmp.eq.s32.totalorder %s24, 1
      %p47 = por %p45, %p46
      %p49 = scmp.ne.s32.totalorder %s32, %s48
      %p50 = scmp.eq.s32.totalorder %s24, 0
      %p51 = por %p49, %p50
      %s53 = sadd.s32 %s52, 1
      %p56 = scmp.eq.s32.totalorder %s18, 1
      %p57 = scmp.ne.s32.totalorder %s52, %s54
      %p58 = scmp.eq.s32.totalorder %s18, 0
      %p59 = por %p57, %p58
      %p60 = scmp.ne.s32.totalorder %s52, %s54
      %p61 = scmp.eq.s32.totalorder %s23, 1
      %p62 = por %p60, %p61
      %p63 = scmp.ne.s32.totalorder %s54, %s55
      %p64 = scmp.eq.s32.totalorder %s23, 0
      %p65 = por %p63, %p64
      %p66 = scmp.ne.s32.totalorder %s54, %s55
      %p67 = scmp.eq.s32.totalorder %s24, 1
      %p68 = por %p66, %p67
      %p70 = scmp.ne.s32.totalorder %s55, %s69
      %p71 = scmp.eq.s32.totalorder %s24, 0
      %p72 = por %p70, %p71
      %s74 = sadd.s32 %s73, 1
      %p77 = scmp.eq.s32.totalorder %s18, 1
      %p78 = scmp.ne.s32.totalorder %s73, %s75
      %p79 = scmp.eq.s32.totalorder %s18, 0
      %p80 = por %p78, %p79
      %p81 = scmp.ne.s32.totalorder %s73, %s75
      %p82 = scmp.eq.s32.totalorder %s23, 1
      %p83 = por %p81, %p82
      %p84 = scmp.ne.s32.totalorder %s75, %s76
      %p85 = scmp.eq.s32.totalorder %s23, 0
      %p86 = por %p84, %p85
      %p87 = scmp.ne.s32.totalorder %s75, %s76
      %p88 = scmp.eq.s32.totalorder %s24, 1
      %p89 = por %p87, %p88
      %p91 = scmp.ne.s32.totalorder %s76, %s90
      %p92 = scmp.eq.s32.totalorder %s24, 0
      %p93 = por %p91, %p92
      %s95 = sadd.s32 %s94, 1
      %p98 = scmp.eq.s32.totalorder %s18, 1
      %p99 = scmp.ne.s32.totalorder %s94, %s96
      %p100 = scmp.eq.s32.totalorder %s18, 0
      %p101 = por %p99, %p100
      %p102 = scmp.ne.s32.totalorder %s94, %s96
      %p103 = scmp.eq.s32.totalorder %s23, 1
      %p104 = por %p102, %p103
      %p105 = scmp.ne.s32.totalorder %s96, %s97
      %p106 = scmp.eq.s32.totalorder %s23, 0
      %p107 = por %p105, %p106
      %p108 = scmp.ne.s32.totalorder %s96, %s97
      %p109 = scmp.eq.s32.totalorder %s24, 1
      %p110 = por %p108, %p109
      %p112 = scmp.ne.s32.totalorder %s97, %s111
      %p113 = scmp.eq.s32.totalorder %s24, 0
      %p114 = por %p112, %p113
      %s116 = sadd.s32 %s115, 1
      %p119 = scmp.eq.s32.totalorder %s18, 1
      %p120 = scmp.ne.s32.totalorder %s115, %s117
      %p121 = scmp.eq.s32.totalorder %s18, 0
      %p122 = por %p120, %p121
      %p123 = scmp.ne.s32.totalorder %s115, %s117
      %p124 = scmp.eq.s32.totalorder %s23, 1
      %p125 = por %p123, %p124
      %p126 = scmp.ne.s32.totalorder %s117, %s118
      %p127 = scmp.eq.s32.totalorder %s23, 0
      %p128 = por %p126, %p127
      %p129 = scmp.ne.s32.totalorder %s117, %s118
      %p130 = scmp.eq.s32.totalorder %s24, 1
      %p131 = por %p129, %p130
      %p133 = scmp.ne.s32.totalorder %s118, %s132
      %p134 = scmp.eq.s32.totalorder %s24, 0
      %p135 = por %p133, %p134
      %s137 = sadd.s32 %s136, 1
      %p140 = scmp.eq.s32.totalorder %s18, 1
      %p141 = scmp.ne.s32.totalorder %s136, %s138
      %p142 = scmp.eq.s32.totalorder %s18, 0
      %p143 = por %p141, %p142
      %p144 = scmp.ne.s32.totalorder %s136, %s138
      %p145 = scmp.eq.s32.totalorder %s23, 1
      %p146 = por %p144, %p145
      %p147 = scmp.ne.s32.totalorder %s138, %s139
      %p148 = scmp.eq.s32.totalorder %s23, 0
      %p149 = por %p147, %p148
      %p150 = scmp.ne.s32.totalorder %s138, %s139
      %p151 = scmp.eq.s32.totalorder %s24, 1
      %p152 = por %p150, %p151
      %p154 = scmp.ne.s32.totalorder %s139, %s153
      %p155 = scmp.eq.s32.totalorder %s24, 0
      %p156 = por %p154, %p155
      %s158 = sadd.s32 %s157, 1
      %p161 = scmp.eq.s32.totalorder %s18, 1
      %p162 = scmp.ne.s32.totalorder %s157, %s159
      %p163 = scmp.eq.s32.totalorder %s18, 0
      %p164 = por %p162, %p163
      %p165 = scmp.ne.s32.totalorder %s157, %s159
      %p166 = scmp.eq.s32.totalorder %s23, 1
      %p167 = por %p165, %p166
      %p168 = scmp.ne.s32.totalorder %s159, %s160
      %p169 = scmp.eq.s32.totalorder %s23, 0
      %p170 = por %p168, %p169
      %p171 = scmp.ne.s32.totalorder %s159, %s160
      %p172 = scmp.eq.s32.totalorder %s24, 1
      %p173 = por %p171, %p172
      %p175 = scmp.ne.s32.totalorder %s160, %s174
      %p176 = scmp.eq.s32.totalorder %s24, 0
      %p177 = por %p175, %p176
      %s179 = sadd.s32 %s178, 1
      %p182 = scmp.eq.s32.totalorder %s18, 1
      %p183 = scmp.ne.s32.totalorder %s178, %s180
      %p184 = scmp.eq.s32.totalorder %s18, 0
      %p185 = por %p183, %p184
      %p186 = scmp.ne.s32.totalorder %s178, %s180
      %p187 = scmp.eq.s32.totalorder %s23, 1
      %p188 = por %p186, %p187
      %p189 = scmp.ne.s32.totalorder %s180, %s181
      %p190 = scmp.eq.s32.totalorder %s23, 0
      %p191 = por %p189, %p190
      %p192 = scmp.ne.s32.totalorder %s180, %s181
      %p193 = scmp.eq.s32.totalorder %s24, 1
      %p194 = por %p192, %p193
      %p196 = scmp.ne.s32.totalorder %s181, %s195
      %p197 = scmp.eq.s32.totalorder %s24, 0
      %p198 = por %p196, %p197
      %s200 = sadd.s32 %s199, 1
      %p203 = scmp.eq.s32.totalorder %s18, 1
      %p204 = scmp.ne.s32.totalorder %s199, %s201
      %p205 = scmp.eq.s32.totalorder %s18, 0
      %p206 = por %p204, %p205
      %p207 = scmp.ne.s32.totalorder %s199, %s201
      %p208 = scmp.eq.s32.totalorder %s23, 1
      %p209 = por %p207, %p208
      %p210 = scmp.ne.s32.totalorder %s201, %s202
      %p211 = scmp.eq.s32.totalorder %s23, 0
      %p212 = por %p210, %p211
      %p213 = scmp.ne.s32.totalorder %s201, %s202
      %p214 = scmp.eq.s32.totalorder %s24, 1
      %p215 = por %p213, %p214
      %p217 = scmp.ne.s32.totalorder %s202, %s216
      %p218 = scmp.eq.s32.totalorder %s24, 0
      %p219 = por %p217, %p218
      %s220 = ssub.s32 %s18, %s25
      %p221 = scmp.eq.s32.totalorder %s220, 0
      %s223 = sadd.s32 %s222, 1
      %s224 = scalar_select %p221, %s222, %s223
      %p227 = pneg %p221
      %p228 = scmp.eq.s32.totalorder %s18, 1
      %p229 = por %p227, %p228
      %p230 = scmp.ne.s32.totalorder %s222, %s225
      %p231 = scmp.eq.s32.totalorder %s18, 0
      %p232 = por %p230, %p231
      %p233 = scmp.ne.s32.totalorder %s222, %s225
      %p234 = scmp.eq.s32.totalorder %s23, 1
      %p235 = por %p233, %p234
      %p236 = scmp.ne.s32.totalorder %s225, %s226
      %p237 = scmp.eq.s32.totalorder %s23, 0
      %p238 = por %p236, %p237
      %p239 = scmp.ne.s32.totalorder %s225, %s226
      %p240 = scmp.eq.s32.totalorder %s24, 1
      %p241 = por %p239, %p240
      %p243 = scmp.ne.s32.totalorder %s226, %s242
      %p244 = scmp.eq.s32.totalorder %s24, 0
      %p245 = por %p243, %p244
      %p246 = scmp.le.s32.totalorder 1, %s18
      %p247 = scmp.lt.s32.totalorder %s18, 3
      %p248 = pnand %p246, %p247
      %p249 = pneg %p248
      // Predicated region
      $region9: #{tpu_custom_call.1} parent=5 // pred_check
        _
      $region10: #{tpu_custom_call.1} parent=5 // pred_check_branch
        %251 = sbr.rel (%p248) target = $region12
      $region11: #{tpu_custom_call.1} parent=5 // pred_region
        %s252 = ssub.s32 %s18, 1
        // Predicated region
        $region13: #{tpu_custom_call.1} parent=11 // pred_check
          %p253 = pneg %p65
        $region14: #{tpu_custom_call.1} parent=11 // pred_check_branch
          %255 = sbr.rel (%p253) target = $region16
        $region15: #{tpu_custom_call.1} parent=11 // pred_region
          _
        $region16: #{tpu_custom_call.1} parent=11 // pred_fallthru
          _
        // Predicated region
        $region17: #{tpu_custom_call.1} parent=11 // pred_check
          %p256 = pneg %p86
        $region18: #{tpu_custom_call.1} parent=11 // pred_check_branch
          %258 = sbr.rel (%p256) target = $region20
        $region19: #{tpu_custom_call.1} parent=11 // pred_region
          _
        $region20: #{tpu_custom_call.1} parent=11 // pred_fallthru
          _
        // Predicated region
        $region21: #{tpu_custom_call.1} parent=11 // pred_check
          %p259 = pneg %p107
        $region22: #{tpu_custom_call.1} parent=11 // pred_check_branch
          %261 = sbr.rel (%p259) target = $region24
        $region23: #{tpu_custom_call.1} parent=11 // pred_region
          _
        $region24: #{tpu_custom_call.1} parent=11 // pred_fallthru
          _
        // Predicated region
        $region25: #{tpu_custom_call.1} parent=11 // pred_check
          %p262 = pneg %p128
        $region26: #{tpu_custom_call.1} parent=11 // pred_check_branch
          %264 = sbr.rel (%p262) target = $region28
        $region27: #{tpu_custom_call.1} parent=11 // pred_region
          _
        $region28: #{tpu_custom_call.1} parent=11 // pred_fallthru
          _
        // Predicated region
        $region29: #{tpu_custom_call.1} parent=11 // pred_check
          %p265 = pneg %p149
        $region30: #{tpu_custom_call.1} parent=11 // pred_check_branch
          %267 = sbr.rel (%p265) target = $region32
        $region31: #{tpu_custom_call.1} parent=11 // pred_region
          _
        $region32: #{tpu_custom_call.1} parent=11 // pred_fallthru
          _
        // Predicated region
        $region33: #{tpu_custom_call.1} parent=11 // pred_check
          %p268 = pneg %p170
        $region34: #{tpu_custom_call.1} parent=11 // pred_check_branch
          %270 = sbr.rel (%p268) target = $region36
        $region35: #{tpu_custom_call.1} parent=11 // pred_region
          _
        $region36: #{tpu_custom_call.1} parent=11 // pred_fallthru
          _
        // Predicated region
        $region37: #{tpu_custom_call.1} parent=11 // pred_check
          %p271 = pneg %p191
        $region38: #{tpu_custom_call.1} parent=11 // pred_check_branch
          %273 = sbr.rel (%p271) target = $region40
        $region39: #{tpu_custom_call.1} parent=11 // pred_region
          _
        $region40: #{tpu_custom_call.1} parent=11 // pred_fallthru
          _
        // Predicated region
        $region41: #{tpu_custom_call.1} parent=11 // pred_check
          %p274 = pneg %p212
        $region42: #{tpu_custom_call.1} parent=11 // pred_check_branch
          %276 = sbr.rel (%p274) target = $region44
        $region43: #{tpu_custom_call.1} parent=11 // pred_region
          _
        $region44: #{tpu_custom_call.1} parent=11 // pred_fallthru
          _
      $region12: #{tpu_custom_call.1} parent=5 // pred_fallthru
        _
      %p277 = scmp.lt.s32.totalorder %s18, 2
      // Predicated region
      $region45: #{tpu_custom_call.1} parent=5 // pred_check
        %p278 = pneg %p277
      $region46: #{tpu_custom_call.1} parent=5 // pred_check_branch
        %280 = sbr.rel (%p278) target = $region48
      $region47: #{tpu_custom_call.1} parent=5 // pred_region
        // Predicated region
        $region49: #{tpu_custom_call.1} parent=47 // pred_check
          %p281 = pneg %p38
        $region50: #{tpu_custom_call.1} parent=47 // pred_check_branch
          %283 = sbr.rel (%p281) target = $region52
        $region51: #{tpu_custom_call.1} parent=47 // pred_region
          %p284 = scmp.lt.s32.totalorder %s18, 1
          %s285 = scalar_select %p284, %s18, 1
          %s286 = smul.addr %s285, 2
          %s287 = smul.addr %s286, 8
          %s288 = scalar_lea.vmem %s0, %s287
        $region52: #{tpu_custom_call.1} parent=47 // pred_fallthru
          _
      $region48: #{tpu_custom_call.1} parent=5 // pred_fallthru
        _
      %p289 = scmp.le.s32.totalorder 1, %s18
      %p290 = scmp.lt.s32.totalorder %s18, 3
      %p291 = pnand %p289, %p290
      %p292 = pneg %p291
      // Predicated region
      $region53: #{tpu_custom_call.1} parent=5 // pred_check
        _
      $region54: #{tpu_custom_call.1} parent=5 // pred_check_branch
        %294 = sbr.rel (%p291) target = $region56
      $region55: #{tpu_custom_call.1} parent=5 // pred_region
        %s295 = ssub.s32 %s18, 1
        %p296 = scmp.lt.s32.totalorder %s23, 1
        %s297 = scalar_select %p296, %s23, 1
        %s298 = smul.addr %s297, 2
        %s299 = smul.addr %s298, 8
        %s300 = scalar_lea.vmem %s0, %s299
        %p301 = pneg %p44
        %p302 = pneg %p41
        %p303 = pneg %p65
        %p304 = pneg %p62
        %p305 = pneg %p86
        %p306 = pneg %p83
        %p307 = pneg %p107
        %p308 = pneg %p104
        %p309 = pneg %p128
        %p310 = pneg %p125
        %p311 = pneg %p149
        %p312 = pneg %p146
        %p313 = pneg %p170
        %p314 = pneg %p167
        %p315 = pneg %p191
        %p316 = pneg %p188
        %p317 = pneg %p212
        %p318 = pneg %p209
        %p319 = pneg %p238
        %p320 = pneg %p235
        %s321 = sand.u32 %s225, 1
        %s322 = scalar_lea.sflag [#allocation3], %s321
        %s323 = sand.u32 %s225, 1
        %s324 = smul.addr %s323, 32
        %s325 = scalar_lea.vmem [#allocation2], %s324
        %p326 = scmp.lt.s32.totalorder %s23, 1
        %s327 = scalar_select %p326, %s23, 1
        %s328 = smul.addr %s327, 2
        %s329 = smul.addr %s328, 8
        %s330 = scalar_lea.vmem %s0, %s329
        %v331 = vld [vmem:[%s1] sm:$0xff]
        %v332 = vld [vmem:[%s6] sm:$0xff]
        %v333 = vld [vmem:[%s6 + $0x8] sm:$0xff]
        %v334 = vld [vmem:[%s4] sm:$0xff]
        %v335 = vld [vmem:[%s5] sm:$0xff]
        %v336 = vld [vmem:[%s7] sm:$0xff]
        %v337 = vld [vmem:[%s7 + $0x8] sm:$0xff]
        %v338 = vld [vmem:[%s8] sm:$0xff]
        %v339 = vld [vmem:[%s8 + $0x8] sm:$0xff]
        %v340 = vld [vmem:[%s2] sm:$0x3]
        %v341 = vld [vmem:[%s3] sm:$0x3]
        %v342 = vld [vmem:[%s330] sm:$0xff]
        %v343 = vld [vmem:[%s330 + $0x8] sm:$0xff]
        %345 = vset.pattern.permute.xlu0 0
        %346 = vperm.xlu0 %345, %v331
        %v347 = vpop.permute.xlu0 %346
        %v349 = vmul.f32 %v347, 0.0
        %v350 = vmul.f32 %v342, %v347
        %v351 = vmul.f32 %v343, %v347
        %v353 = vlaneseq
        %v354 = vshrl.u32 %v353, 7
        %v355 = vsub.s32 0, %v354
        %v356 = vrot.slane %v340, %v355
        %v357 = vlaneseq
        %v358 = vshrl.u32 %v357, 7
        %v359 = vsub.s32 1, %v358
        %v360 = vrot.slane %v340, %v359
        %361 = vrot.lane.b32.xlu0 %v356, 111
        %v362 = vpop.permute.xlu0 %361
        %363 = vrot.lane.b32.xlu0 %v360, 111
        %v364 = vpop.permute.xlu0 %363
        %vm365 = vcmask 908288
        %v366 = vsel %vm365, %v362, %v364
        %v370 = vmul.f32 %v349, %v362
        %v371 = vmul.f32 %v350, %v366
        %v372 = vmul.f32 %v351, %v364
        %v373 = vadd.f32 %v370, 0.0
        %v374 = vadd.f32 %v371, 0.0
        %v375 = vadd.f32 %v372, 0.0
        %376 = vset.pattern.permute.xlu0 1
        %377 = vperm.xlu0 %376, %v331
        %v378 = vpop.permute.xlu0 %377
        %v380 = vmul.f32 %v378, 0.0
        %v381 = vmul.f32 %v342, %v378
        %v382 = vmul.f32 %v343, %v378
        %386 = vrot.lane.b32.xlu0 %v380, 127
        %v387 = vpop.permute.xlu0 %386
        %388 = vrot.lane.b32.xlu0 %v381, 127
        %v389 = vpop.permute.xlu0 %388
        %390 = vrot.lane.b32.xlu0 %v382, 127
        %v391 = vpop.permute.xlu0 %390
        %vm392 = vcmask 1039360
        %v393 = vsel %vm392, %v387, %v389
        %v394 = vsel %vm392, %v389, %v391
        %v398 = vadd.f32 %v373, %v393
        %v399 = vadd.f32 %v374, %v394
        %v400 = vadd.f32 %v375, %v391
        %401 = vset.pattern.permute.xlu0 2
        %402 = vperm.xlu0 %401, %v331
        %v403 = vpop.permute.xlu0 %402
        %v405 = vmul.f32 %v403, 0.0
        %v406 = vmul.f32 %v342, %v403
        %v407 = vmul.f32 %v343, %v403
        %v409 = vlaneseq
        %v410 = vshrl.u32 %v409, 7
        %v411 = vsub.s32 0, %v410
        %v412 = vrot.slane %v341, %v411
        %v413 = vlaneseq
        %v414 = vshrl.u32 %v413, 7
        %v415 = vsub.s32 1, %v414
        %v416 = vrot.slane %v341, %v415
        %417 = vrot.lane.b32.xlu0 %v412, 113
        %v418 = vpop.permute.xlu0 %417
        %419 = vrot.lane.b32.xlu0 %v416, 113
        %v420 = vpop.permute.xlu0 %419
        %vm421 = vcmask 924672
        %v422 = vsel %vm421, %v418, %v420
        %v426 = vmul.f32 %v405, %v418
        %v427 = vmul.f32 %v406, %v422
        %v428 = vmul.f32 %v407, %v420
        %432 = vrot.lane.b32.xlu0 %v426, 126
        %v433 = vpop.permute.xlu0 %432
        %434 = vrot.lane.b32.xlu0 %v427, 126
        %v435 = vpop.permute.xlu0 %434
        %436 = vrot.lane.b32.xlu0 %v428, 126
        %v437 = vpop.permute.xlu0 %436
        %vm438 = vcmask 1031168
        %v439 = vsel %vm438, %v433, %v435
        %v440 = vsel %vm438, %v435, %v437
        %v444 = vadd.f32 %v398, %v439
        %v445 = vadd.f32 %v399, %v440
        %v446 = vadd.f32 %v400, %v437
        %447 = vset.pattern.permute.xlu0 3
        %448 = vperm.xlu0 %447, %v331
        %v449 = vpop.permute.xlu0 %448
        %v451 = vmul.f32 %v449, 0.0
        %v452 = vmul.f32 %v342, %v449
        %v453 = vmul.f32 %v343, %v449
        %454 = vrot.lane.b32.xlu0 %v356, 127
        %v455 = vpop.permute.xlu0 %454
        %456 = vrot.lane.b32.xlu0 %v360, 127
        %v457 = vpop.permute.xlu0 %456
        %v458 = vsel %vm392, %v455, %v457
        %v462 = vmul.f32 %v451, %v455
        %v463 = vmul.f32 %v452, %v458
        %v464 = vmul.f32 %v453, %v457
        %468 = vrot.lane.b32.xlu0 %v462, 112
        %v469 = vpop.permute.xlu0 %468
        %470 = vrot.lane.b32.xlu0 %v463, 112
        %v471 = vpop.permute.xlu0 %470
        %472 = vrot.lane.b32.xlu0 %v464, 112
        %v473 = vpop.permute.xlu0 %472
        %vm474 = vcmask 916480
        %v475 = vsel %vm474, %v469, %v471
        %v476 = vsel %vm474, %v471, %v473
        %v480 = vadd.f32 %v444, %v475
        %v481 = vadd.f32 %v445, %v476
        %v482 = vadd.f32 %v446, %v473
        %483 = vset.pattern.permute.xlu0 4
        %484 = vperm.xlu0 %483, %v331
        %v485 = vpop.permute.xlu0 %484
        %v487 = vmul.f32 %v342, %v485
        %v488 = vmul.f32 %v343, %v485
        %491 = vrot.lane.b32.xlu0 %v487, 111
        %v492 = vpop.permute.xlu0 %491
        %493 = vrot.lane.b32.xlu0 %v488, 111
        %v494 = vpop.permute.xlu0 %493
        %v495 = vsel %vm365, %v492, %v494
        %v499 = vadd.f32 %v480, %v492
        %v500 = vadd.f32 %v481, %v495
        %v501 = vadd.f32 %v482, %v494
        %502 = vset.pattern.permute.xlu0 5
        %503 = vperm.xlu0 %502, %v331
        %v504 = vpop.permute.xlu0 %503
        %v506 = vmul.f32 %v342, %v504
        %v507 = vmul.f32 %v343, %v504
        %v508 = vmul.f32 %v504, 0.0
        %509 = vrot.lane.b32.xlu0 %v412, 1
        %v510 = vpop.permute.xlu0 %509
        %511 = vrot.lane.b32.xlu0 %v416, 1
        %v512 = vpop.permute.xlu0 %511
        %vm513 = vcmask 7168
        %v514 = vsel %vm513, %v510, %v512
        %v518 = vmul.f32 %v506, %v510
        %v519 = vmul.f32 %v507, %v514
        %v520 = vmul.f32 %v508, %v512
        %524 = vrot.lane.b32.xlu0 %v518, 110
        %v525 = vpop.permute.xlu0 %524
        %526 = vrot.lane.b32.xlu0 %v519, 110
        %v527 = vpop.permute.xlu0 %526
        %528 = vrot.lane.b32.xlu0 %v520, 110
        %v529 = vpop.permute.xlu0 %528
        %vm530 = vcmask 900096
        %v531 = vsel %vm530, %v525, %v527
        %v532 = vsel %vm530, %v527, %v529
        %v536 = vadd.f32 %v499, %v525
        %v537 = vadd.f32 %v500, %v531
        %v538 = vadd.f32 %v501, %v532
        %539 = vset.pattern.permute.xlu0 6
        %540 = vperm.xlu0 %539, %v331
        %v541 = vpop.permute.xlu0 %540
        %v543 = vmul.f32 %v342, %v541
        %v544 = vmul.f32 %v343, %v541
        %v545 = vmul.f32 %v541, 0.0
        %546 = vrot.lane.b32.xlu0 %v356, 15
        %v547 = vpop.permute.xlu0 %546
        %548 = vrot.lane.b32.xlu0 %v360, 15
        %v549 = vpop.permute.xlu0 %548
        %vm550 = vcmask 121856
        %v551 = vsel %vm550, %v547, %v549
        %v555 = vmul.f32 %v543, %v547
        %v556 = vmul.f32 %v544, %v551
        %v557 = vmul.f32 %v545, %v549
        %561 = vrot.lane.b32.xlu0 %v555, 96
        %v562 = vpop.permute.xlu0 %561
        %563 = vrot.lane.b32.xlu0 %v556, 96
        %v564 = vpop.permute.xlu0 %563
        %565 = vrot.lane.b32.xlu0 %v557, 96
        %v566 = vpop.permute.xlu0 %565
        %vm567 = vcmask 785408
        %v568 = vsel %vm567, %v562, %v564
        %v569 = vsel %vm567, %v564, %v566
        %v573 = vadd.f32 %v536, %v562
        %v574 = vadd.f32 %v537, %v568
        %v575 = vadd.f32 %v538, %v569
        %576 = vset.pattern.permute.xlu0 7
        %577 = vperm.xlu0 %576, %v331
        %v578 = vpop.permute.xlu0 %577
        %v580 = vmul.f32 %v342, %v578
        %v581 = vmul.f32 %v343, %v578
        %v582 = vmul.f32 %v578, 0.0
        %586 = vrot.lane.b32.xlu0 %v580, 95
        %v587 = vpop.permute.xlu0 %586
        %588 = vrot.lane.b32.xlu0 %v581, 95
        %v589 = vpop.permute.xlu0 %588
        %590 = vrot.lane.b32.xlu0 %v582, 95
        %v591 = vpop.permute.xlu0 %590
        %vm592 = vcmask 777216
        %v593 = vsel %vm592, %v587, %v589
        %v594 = vsel %vm592, %v589, %v591
        %v598 = vadd.f32 %v573, %v587
        %v599 = vadd.f32 %v574, %v593
        %v600 = vadd.f32 %v575, %v594
        %601 = vset.pattern.permute.xlu0 8
        %602 = vperm.xlu0 %601, %v331
        %v603 = vpop.permute.xlu0 %602
        %v605 = vmul.f32 %v342, %v603
        %v606 = vmul.f32 %v343, %v603
        %v607 = vmul.f32 %v603, 0.0
        %608 = vrot.lane.b32.xlu0 %v412, 17
        %v609 = vpop.permute.xlu0 %608
        %610 = vrot.lane.b32.xlu0 %v416, 17
        %v611 = vpop.permute.xlu0 %610
        %vm612 = vcmask 138240
        %v613 = vsel %vm612, %v609, %v611
        %v617 = vmul.f32 %v605, %v609
        %v618 = vmul.f32 %v606, %v613
        %v619 = vmul.f32 %v607, %v611
        %623 = vrot.lane.b32.xlu0 %v617, 94
        %v624 = vpop.permute.xlu0 %623
        %625 = vrot.lane.b32.xlu0 %v618, 94
        %v626 = vpop.permute.xlu0 %625
        %627 = vrot.lane.b32.xlu0 %v619, 94
        %v628 = vpop.permute.xlu0 %627
        %vm629 = vcmask 769024
        %v630 = vsel %vm629, %v624, %v626
        %v631 = vsel %vm629, %v626, %v628
        %v635 = vadd.f32 %v598, %v624
        %v636 = vadd.f32 %v599, %v630
        %v637 = vadd.f32 %v600, %v631
        %639 = vset.pattern.permute.xlu0 0
        %640 = vperm.xlu0 %639, %v334
        %v641 = vpop.permute.xlu0 %640
        %v643 = vmul.f32 %v635, %v641
        %v644 = vmul.f32 %v636, %v641
        %v645 = vmul.f32 %v637, %v641
        %647 = vset.pattern.permute.xlu0 0
        %648 = vperm.xlu0 %647, %v335
        %v649 = vpop.permute.xlu0 %648
        %v651 = vadd.f32 %v643, %v649
        %v652 = vadd.f32 %v644, %v649
        %v653 = vadd.f32 %v645, %v649
        %v654 = vmax.f32 %v651, 0.0
        %v655 = vmax.f32 %v652, 0.0
        %v656 = vmax.f32 %v653, 0.0
        %658 = vset.pattern.permute.xlu0 0
        %659 = vperm.xlu0 %658, %v332
        %v660 = vpop.permute.xlu0 %659
        %663 = vset.pattern.permute.xlu0 0
        %664 = vperm.xlu0 %663, %v333
        %v665 = vpop.permute.xlu0 %664
        %v667 = vlaneseq
        %v668 = vshrl.u32 %v667, 7
        %v669 = vsub.s32 0, %v668
        %v670 = vrot.slane %v654, %v669
        %v671 = vlaneseq
        %v672 = vshrl.u32 %v671, 7
        %v673 = vsub.s32 0, %v672
        %v674 = vrot.slane %v655, %v673
        %v675 = vlaneseq
        %v676 = vshrl.u32 %v675, 7
        %v677 = vsub.s32 0, %v676
        %v678 = vrot.slane %v656, %v677
        %v679 = vmul.f32 %v660, %v670
        %v680 = vmul.f32 %v660, %v674
        %v681 = vmul.f32 %v660, %v678
        %v682 = vmul.f32 %v665, %v670
        %v683 = vmul.f32 %v665, %v674
        %v684 = vmul.f32 %v665, %v678
        %v685 = vadd.f32 %v679, 0.0
        %v686 = vadd.f32 %v680, 0.0
        %v687 = vadd.f32 %v681, 0.0
        %v688 = vadd.f32 %v682, 0.0
        %v689 = vadd.f32 %v683, 0.0
        %v690 = vadd.f32 %v684, 0.0
        %691 = vset.pattern.permute.xlu0 1
        %692 = vperm.xlu0 %691, %v332
        %v693 = vpop.permute.xlu0 %692
        %695 = vset.pattern.permute.xlu0 1
        %696 = vperm.xlu0 %695, %v333
        %v697 = vpop.permute.xlu0 %696
        %v699 = vlaneseq
        %v700 = vshrl.u32 %v699, 7
        %v701 = vsub.s32 1, %v700
        %v702 = vrot.slane %v654, %v701
        %v703 = vlaneseq
        %v704 = vshrl.u32 %v703, 7
        %v705 = vsub.s32 1, %v704
        %v706 = vrot.slane %v655, %v705
        %v707 = vlaneseq
        %v708 = vshrl.u32 %v707, 7
        %v709 = vsub.s32 1, %v708
        %v710 = vrot.slane %v656, %v709
        %v711 = vmul.f32 %v693, %v702
        %v712 = vmul.f32 %v693, %v706
        %v713 = vmul.f32 %v693, %v710
        %v714 = vmul.f32 %v697, %v702
        %v715 = vmul.f32 %v697, %v706
        %v716 = vmul.f32 %v697, %v710
        %v717 = vadd.f32 %v685, %v711
        %v718 = vadd.f32 %v686, %v712
        %v719 = vadd.f32 %v687, %v713
        %v720 = vadd.f32 %v688, %v714
        %v721 = vadd.f32 %v689, %v715
        %v722 = vadd.f32 %v690, %v716
        %723 = vset.pattern.permute.xlu0 2
        %724 = vperm.xlu0 %723, %v332
        %v725 = vpop.permute.xlu0 %724
        %727 = vset.pattern.permute.xlu0 2
        %728 = vperm.xlu0 %727, %v333
        %v729 = vpop.permute.xlu0 %728
        %v731 = vlaneseq
        %v732 = vshrl.u32 %v731, 7
        %v733 = vsub.s32 2, %v732
        %v734 = vrot.slane %v654, %v733
        %v735 = vlaneseq
        %v736 = vshrl.u32 %v735, 7
        %v737 = vsub.s32 2, %v736
        %v738 = vrot.slane %v655, %v737
        %v739 = vlaneseq
        %v740 = vshrl.u32 %v739, 7
        %v741 = vsub.s32 2, %v740
        %v742 = vrot.slane %v656, %v741
        %v743 = vmul.f32 %v725, %v734
        %v744 = vmul.f32 %v725, %v738
        %v745 = vmul.f32 %v725, %v742
        %v746 = vmul.f32 %v729, %v734
        %v747 = vmul.f32 %v729, %v738
        %v748 = vmul.f32 %v729, %v742
        %v749 = vadd.f32 %v717, %v743
        %v750 = vadd.f32 %v718, %v744
        %v751 = vadd.f32 %v719, %v745
        %v752 = vadd.f32 %v720, %v746
        %v753 = vadd.f32 %v721, %v747
        %v754 = vadd.f32 %v722, %v748
        %755 = vset.pattern.permute.xlu0 3
        %756 = vperm.xlu0 %755, %v332
        %v757 = vpop.permute.xlu0 %756
        %759 = vset.pattern.permute.xlu0 3
        %760 = vperm.xlu0 %759, %v333
        %v761 = vpop.permute.xlu0 %760
        %v763 = vlaneseq
        %v764 = vshrl.u32 %v763, 7
        %v765 = vsub.s32 3, %v764
        %v766 = vrot.slane %v654, %v765
        %v767 = vlaneseq
        %v768 = vshrl.u32 %v767, 7
        %v769 = vsub.s32 3, %v768
        %v770 = vrot.slane %v655, %v769
        %v771 = vlaneseq
        %v772 = vshrl.u32 %v771, 7
        %v773 = vsub.s32 3, %v772
        %v774 = vrot.slane %v656, %v773
        %v775 = vmul.f32 %v757, %v766
        %v776 = vmul.f32 %v757, %v770
        %v777 = vmul.f32 %v757, %v774
        %v778 = vmul.f32 %v761, %v766
        %v779 = vmul.f32 %v761, %v770
        %v780 = vmul.f32 %v761, %v774
        %v781 = vadd.f32 %v749, %v775
        %v782 = vadd.f32 %v750, %v776
        %v783 = vadd.f32 %v751, %v777
        %v784 = vadd.f32 %v752, %v778
        %v785 = vadd.f32 %v753, %v779
        %v786 = vadd.f32 %v754, %v780
        %787 = vset.pattern.permute.xlu0 4
        %788 = vperm.xlu0 %787, %v332
        %v789 = vpop.permute.xlu0 %788
        %791 = vset.pattern.permute.xlu0 4
        %792 = vperm.xlu0 %791, %v333
        %v793 = vpop.permute.xlu0 %792
        %v795 = vlaneseq
        %v796 = vshrl.u32 %v795, 7
        %v797 = vsub.s32 4, %v796
        %v798 = vrot.slane %v654, %v797
        %v799 = vlaneseq
        %v800 = vshrl.u32 %v799, 7
        %v801 = vsub.s32 4, %v800
        %v802 = vrot.slane %v655, %v801
        %v803 = vlaneseq
        %v804 = vshrl.u32 %v803, 7
        %v805 = vsub.s32 4, %v804
        %v806 = vrot.slane %v656, %v805
        %v807 = vmul.f32 %v789, %v798
        %v808 = vmul.f32 %v789, %v802
        %v809 = vmul.f32 %v789, %v806
        %v810 = vmul.f32 %v793, %v798
        %v811 = vmul.f32 %v793, %v802
        %v812 = vmul.f32 %v793, %v806
        %v813 = vadd.f32 %v781, %v807
        %v814 = vadd.f32 %v782, %v808
        %v815 = vadd.f32 %v783, %v809
        %v816 = vadd.f32 %v784, %v810
        %v817 = vadd.f32 %v785, %v811
        %v818 = vadd.f32 %v786, %v812
        %819 = vset.pattern.permute.xlu0 5
        %820 = vperm.xlu0 %819, %v332
        %v821 = vpop.permute.xlu0 %820
        %823 = vset.pattern.permute.xlu0 5
        %824 = vperm.xlu0 %823, %v333
        %v825 = vpop.permute.xlu0 %824
        %v827 = vlaneseq
        %v828 = vshrl.u32 %v827, 7
        %v829 = vsub.s32 5, %v828
        %v830 = vrot.slane %v654, %v829
        %v831 = vlaneseq
        %v832 = vshrl.u32 %v831, 7
        %v833 = vsub.s32 5, %v832
        %v834 = vrot.slane %v655, %v833
        %v835 = vlaneseq
        %v836 = vshrl.u32 %v835, 7
        %v837 = vsub.s32 5, %v836
        %v838 = vrot.slane %v656, %v837
        %v839 = vmul.f32 %v821, %v830
        %v840 = vmul.f32 %v821, %v834
        %v841 = vmul.f32 %v821, %v838
        %v842 = vmul.f32 %v825, %v830
        %v843 = vmul.f32 %v825, %v834
        %v844 = vmul.f32 %v825, %v838
        %v845 = vadd.f32 %v813, %v839
        %v846 = vadd.f32 %v814, %v840
        %v847 = vadd.f32 %v815, %v841
        %v848 = vadd.f32 %v816, %v842
        %v849 = vadd.f32 %v817, %v843
        %v850 = vadd.f32 %v818, %v844
        %851 = vset.pattern.permute.xlu0 6
        %852 = vperm.xlu0 %851, %v332
        %v853 = vpop.permute.xlu0 %852
        %855 = vset.pattern.permute.xlu0 6
        %856 = vperm.xlu0 %855, %v333
        %v857 = vpop.permute.xlu0 %856
        %v859 = vlaneseq
        %v860 = vshrl.u32 %v859, 7
        %v861 = vsub.s32 6, %v860
        %v862 = vrot.slane %v654, %v861
        %v863 = vlaneseq
        %v864 = vshrl.u32 %v863, 7
        %v865 = vsub.s32 6, %v864
        %v866 = vrot.slane %v655, %v865
        %v867 = vlaneseq
        %v868 = vshrl.u32 %v867, 7
        %v869 = vsub.s32 6, %v868
        %v870 = vrot.slane %v656, %v869
        %v871 = vmul.f32 %v853, %v862
        %v872 = vmul.f32 %v853, %v866
        %v873 = vmul.f32 %v853, %v870
        %v874 = vmul.f32 %v857, %v862
        %v875 = vmul.f32 %v857, %v866
        %v876 = vmul.f32 %v857, %v870
        %v877 = vadd.f32 %v845, %v871
        %v878 = vadd.f32 %v846, %v872
        %v879 = vadd.f32 %v847, %v873
        %v880 = vadd.f32 %v848, %v874
        %v881 = vadd.f32 %v849, %v875
        %v882 = vadd.f32 %v850, %v876
        %883 = vset.pattern.permute.xlu0 7
        %884 = vperm.xlu0 %883, %v332
        %v885 = vpop.permute.xlu0 %884
        %887 = vset.pattern.permute.xlu0 7
        %888 = vperm.xlu0 %887, %v333
        %v889 = vpop.permute.xlu0 %888
        %v891 = vlaneseq
        %v892 = vshrl.u32 %v891, 7
        %v893 = vsub.s32 7, %v892
        %v894 = vrot.slane %v654, %v893
        %v895 = vlaneseq
        %v896 = vshrl.u32 %v895, 7
        %v897 = vsub.s32 7, %v896
        %v898 = vrot.slane %v655, %v897
        %v899 = vlaneseq
        %v900 = vshrl.u32 %v899, 7
        %v901 = vsub.s32 7, %v900
        %v902 = vrot.slane %v656, %v901
        %v903 = vmul.f32 %v885, %v894
        %v904 = vmul.f32 %v885, %v898
        %v905 = vmul.f32 %v885, %v902
        %v906 = vmul.f32 %v889, %v894
        %v907 = vmul.f32 %v889, %v898
        %v908 = vmul.f32 %v889, %v902
        %v909 = vadd.f32 %v877, %v903
        %v910 = vadd.f32 %v878, %v904
        %v911 = vadd.f32 %v879, %v905
        %v912 = vadd.f32 %v880, %v906
        %v913 = vadd.f32 %v881, %v907
        %v914 = vadd.f32 %v882, %v908
        %916 = vset.pattern.permute.xlu0 0
        %917 = vperm.xlu0 %916, %v336
        %v918 = vpop.permute.xlu0 %917
        %921 = vset.pattern.permute.xlu0 0
        %922 = vperm.xlu0 %921, %v337
        %v923 = vpop.permute.xlu0 %922
        %v925 = vmul.f32 %v909, %v918
        %v926 = vmul.f32 %v910, %v918
        %v927 = vmul.f32 %v911, %v918
        %v928 = vmul.f32 %v912, %v923
        %v929 = vmul.f32 %v913, %v923
        %v930 = vmul.f32 %v914, %v923
        %932 = vset.pattern.permute.xlu0 0
        %933 = vperm.xlu0 %932, %v338
        %v934 = vpop.permute.xlu0 %933
        %937 = vset.pattern.permute.xlu0 0
        %938 = vperm.xlu0 %937, %v339
        %v939 = vpop.permute.xlu0 %938
        %v941 = vadd.f32 %v925, %v934
        %v942 = vadd.f32 %v926, %v934
        %v943 = vadd.f32 %v927, %v934
        %v944 = vadd.f32 %v928, %v939
        %v945 = vadd.f32 %v929, %v939
        %v946 = vadd.f32 %v930, %v939
        %v947 = vmax.f32 %v941, 0.0
        %v948 = vmax.f32 %v942, 0.0
        %v949 = vmax.f32 %v943, 0.0
        %v950 = vmax.f32 %v944, 0.0
        %v951 = vmax.f32 %v945, 0.0
        %v952 = vmax.f32 %v946, 0.0
        %959 = vrot.lane.b32.xlu0 %v947, 17
        %v960 = vpop.permute.xlu0 %959
        %961 = vrot.lane.b32.xlu0 %v948, 17
        %v962 = vpop.permute.xlu0 %961
        %963 = vrot.lane.b32.xlu0 %v949, 17
        %v964 = vpop.permute.xlu0 %963
        %965 = vrot.lane.b32.xlu0 %v950, 17
        %v966 = vpop.permute.xlu0 %965
        %967 = vrot.lane.b32.xlu0 %v951, 17
        %v968 = vpop.permute.xlu0 %967
        %969 = vrot.lane.b32.xlu0 %v952, 17
        %v970 = vpop.permute.xlu0 %969
        %v971 = vsel %vm612, %v960, %v962
        %v972 = vsel %vm612, %v962, %v964
        %v973 = vsel %vm612, %v966, %v968
        %v974 = vsel %vm612, %v968, %v970
        %979 = vst [vmem:[%s325] sm:$0xff] %v971
        %980 = vst [vmem:[%s325 + $0x8] sm:$0xff] %v972
        %981 = vst [vmem:[%s325 + $0x10] sm:$0xff] %v973
        %982 = vst [vmem:[%s325 + $0x18] sm:$0xff] %v974
        %s983 = sand.u32 %s225, 1
        %s984 = scalar_lea.sflag [#allocation3], %s983
        %s985 = sand.u32 %s225, 1
        %s986 = smul.addr %s985, 32
        %s987 = scalar_lea.vmem [#allocation2], %s986
        // Predicated region
        $region57: #{tpu_custom_call.1} parent=55 // pred_check
          %p988 = pneg %p235
        $region58: #{tpu_custom_call.1} parent=55 // pred_check_branch
          %990 = sbr.rel (%p988) target = $region60
        $region59: #{tpu_custom_call.1} parent=55 // pred_region
          %s992 = ssub.s32 512, 512
          %993 = vsyncadd %s984, %s992
          %s994 = smul.addr %s23, 4
          %s995 = smul.addr %s994, 128
          %s996 = scalar_lea.hbm %s9, %s995
          %s997 = sshll.u32 %s987, 4
          %s998 = int_to_ptr.vmem [resolvable:$true] %s997
          %1003 = dma.vmem_to_hbm [thread:$0]  %s998, 512, %s996, %s984, 256, 256, 16
        $region60: #{tpu_custom_call.1} parent=55 // pred_fallthru
          _
      $region56: #{tpu_custom_call.1} parent=5 // pred_fallthru
        _
      %p1004 = scmp.le.s32.totalorder 2, %s18
      // Predicated region
      $region61: #{tpu_custom_call.1} parent=5 // pred_check
        %p1005 = pneg %p1004
      $region62: #{tpu_custom_call.1} parent=5 // pred_check_branch
        %1007 = sbr.rel (%p1005) target = $region64
      $region63: #{tpu_custom_call.1} parent=5 // pred_region
        %s1008 = ssub.s32 %s18, 2
        // Predicated region
        $region65: #{tpu_custom_call.1} parent=63 // pred_check
          %p1009 = pneg %p241
        $region66: #{tpu_custom_call.1} parent=63 // pred_check_branch
          %1011 = sbr.rel (%p1009) target = $region68
        $region67: #{tpu_custom_call.1} parent=63 // pred_region
          %s1012 = sand.u32 %s226, 1
          %s1013 = scalar_lea.sflag [#allocation3], %s1012
          %s1014 = sand.u32 %s226, 1
          %s1015 = smul.addr %s1014, 32
          %s1016 = scalar_lea.vmem [#allocation2], %s1015
          %1017 = dma.done %s1013, 512
        $region68: #{tpu_custom_call.1} parent=63 // pred_fallthru
          _
      $region64: #{tpu_custom_call.1} parent=5 // pred_fallthru
        _
    $region6: #{tpu_custom_call.1} parent=1 // loop_footer
      %s22 = sadd.s32 1, %s18
    $region7: #{tpu_custom_call.1} parent=1 // loop_footer_branch
      %17 = sbr.rel target = $region3
    $region8: #{tpu_custom_call.1} parent=1 // loop_exit
      _
    %1018 = vsyncpa [#allocation3], 1
    %s1019 = scalar_lea.sflag [#allocation3], 1
    %1020 = vsyncpa %s1019, 1

</llo_original>
